<compile_context>
chip_gen: v6e
topology: v6e:2x2x1
jax: 0.10.0
libtpu: 0.0.40
codegen_flags: <defaults>
</compile_context>

<pallas_src>
import jax
import jax.numpy as jnp
from jax import lax
from jax.experimental import pallas as pl
from jax.experimental.pallas import tpu as pltpu

LN_EPS = 1e-5  # PyTorch nn.LayerNorm default


def prediction_kernel(x_ref, w_ref, b_ref, o_ref):
    # x_ref: (TM, D), w_ref: (D, 3) (gamma-folded), b_ref: (1, 3) (beta-folded),
    # o_ref: (TM, 3)
    x = x_ref[...].astype(jnp.float32)

    # --- LayerNorm statistics (affine already folded into w/b) ---
    mean = jnp.mean(x, axis=-1, keepdims=True)          # (TM, 1)  XLU reduce
    xc = x - mean                                        # (TM, D)  one VPU pass
    var = jnp.mean(xc * xc, axis=-1, keepdims=True)      # (TM, 1)
    rstd = lax.rsqrt(var + LN_EPS)                       # (TM, 1)  EUP

    # --- Linear(dim -> 3) on the MXU.  Normalization scale is applied on the
    # narrow (TM, 3) result instead of the wide (TM, D) activation:
    #   ((xc * rstd) @ W) == (xc @ W) * rstd
    y = jnp.dot(xc, w_ref[...], preferred_element_type=jnp.float32)
    y = y * rstd + b_ref[...]                            # (TM, 3) narrow ops

    # --- Sigmoid (exact; exp on EUP, narrow tensor so divide cost is tiny) ---
    o_ref[...] = (1.0 / (1.0 + jnp.exp(-y))).astype(o_ref.dtype)


def _pick_tile_rows(N, D, dtype):
    """Largest sublane-aligned row tile keeping the double-buffered input
    stream well under the smallest (v5e, 16 MiB) scoped-VMEM default."""
    align = 16 if dtype == jnp.bfloat16 else 8
    budget_bytes = 10 * 1024 * 1024          # headroom below 16 MiB scoped VMEM
    bytes_per_row = D * max(jnp.dtype(dtype).itemsize, 2)
    t = budget_bytes // (2 * bytes_per_row)  # 2 = double buffering
    t = max(align, min(2048, (t // align) * align))
    n_up = ((N + align - 1) // align) * align
    return max(align, min(t, n_up))          # don't tile far beyond N


def prediction_forward(x, gamma, beta, w, wb, *, tile_rows=None):
    """x: (B, S, D) -> (B, S, 3).  gamma/beta: (D,), w: (D, 3), wb: (3,)."""
    B, S, D = x.shape
    N = B * S
    if tile_rows is None:
        tile_rows = _pick_tile_rows(N, D, x.dtype)

    x2 = x.reshape(N, D)

    # Fold LayerNorm affine into the linear layer (exact, done in float32):
    #   ((x-mu)/sigma * gamma + beta) @ W + wb
    #     = ((x-mu)/sigma) @ (gamma[:,None] * W) + (beta @ W + wb)
    w_f = w.astype(jnp.float32)
    w_fold = gamma.astype(jnp.float32)[:, None] * w_f            # (D, 3)
    b_fold = (beta.astype(jnp.float32) @ w_f
              + wb.astype(jnp.float32)).reshape(1, 3)            # (1, 3)

    itemsize = jnp.dtype(x.dtype).itemsize
    cost = pl.CostEstimate(
        flops=N * (10 * D + 20),
        transcendentals=N * 4,
        bytes_accessed=N * D * itemsize + N * 3 * itemsize + D * 3 * 4 + 3 * 4,
    )

    out = pl.pallas_call(
        prediction_kernel,
        out_shape=jax.ShapeDtypeStruct((N, 3), x.dtype),
        grid_spec=pltpu.PrefetchScalarGridSpec(
            num_scalar_prefetch=0,
            grid=(pl.cdiv(N, tile_rows),),
            in_specs=[
                pl.BlockSpec((tile_rows, D), lambda i: (i, 0)),  # x rows
                pl.BlockSpec((D, 3), lambda i: (0, 0)),          # folded weight
                pl.BlockSpec((1, 3), lambda i: (0, 0)),          # folded bias
            ],
            # Output stays 3 lanes wide: writeback is 3/D of read traffic, so
            # masked stores are not the binding slot; padding adds HBM bytes.
            out_specs=pl.BlockSpec((tile_rows, 3), lambda i: (i, 0)),
        ),
        compiler_params=pltpu.CompilerParams(
            dimension_semantics=("parallel",)),
        cost_estimate=cost,
    )(x2, w_fold, b_fold)

    return out.reshape(B, S, 3)


def reference_forward(x, gamma, beta, w, wb):
    xf = x.astype(jnp.float32)
    mean = jnp.mean(xf, axis=-1, keepdims=True)
    var = jnp.mean((xf - mean) ** 2, axis=-1, keepdims=True)
    xn = (xf - mean) / jnp.sqrt(var + LN_EPS) * gamma + beta
    y = xn @ w.astype(jnp.float32) + wb
    return (1.0 / (1.0 + jnp.exp(-y))).astype(x.dtype)


if __name__ == "__main__":
    # Module default dim=384; small deterministic setup: batch=2, seq=8.
    B, S, D = 2, 8, 384
    key = jax.random.PRNGKey(0)
    kx, kw, kb, kg, kbe = jax.random.split(key, 5)

    x = jax.random.normal(kx, (B, S, D), dtype=jnp.float32)

    # Non-trivial LayerNorm affine so the gamma/beta fold is exercised.
    gamma = 1.0 + 0.1 * jax.random.normal(kg, (D,), dtype=jnp.float32)
    beta = 0.1 * jax.random.normal(kbe, (D,), dtype=jnp.float32)
    bound = 1.0 / (D ** 0.5)
    w = jax.random.uniform(kw, (D, 3), minval=-bound, maxval=bound,
                           dtype=jnp.float32)
    wb = jax.random.uniform(kb, (3,), minval=-bound, maxval=bound,
                            dtype=jnp.float32)

    out = jax.block_until_ready(prediction_forward(x, gamma, beta, w, wb))
    ref = reference_forward(x, gamma, beta, w, wb)
    assert out.shape == (B, S, 3)
    assert jnp.allclose(out, ref, atol=2e-5, rtol=2e-5), "mismatch vs reference"

    # Ragged row count (N not a multiple of the tile / sublane alignment):
    # exercises the pl.cdiv grid path where Pallas masks the partial block.
    B2, S2 = 3, 5
    x2 = jax.random.normal(kx, (B2, S2, D), dtype=jnp.float32)
    out2 = jax.block_until_ready(prediction_forward(x2, gamma, beta, w, wb))
    ref2 = reference_forward(x2, gamma, beta, w, wb)
    assert out2.shape == (B2, S2, 3)
    assert jnp.allclose(out2, ref2, atol=2e-5, rtol=2e-5), "ragged mismatch"

    print("KERNEL_OK")
</pallas_src>

<mosaic_0001>
module attributes {stable_mosaic.version = 11 : i64} {
  func.func @prediction_kernel(%arg0: i32, %arg1: memref<16x384xf32, #tpu.memory_space<vmem>>, %arg2: memref<384x3xf32, #tpu.memory_space<vmem>>, %arg3: memref<1x3xf32, #tpu.memory_space<vmem>>, %arg4: memref<16x3xf32, #tpu.memory_space<vmem>>) attributes {dimension_semantics = [#tpu.dimension_semantics<parallel>], iteration_bounds = array<i64: 1>, scalar_prefetch = 0 : i64, scratch_operands = 0 : i64, tpu.core_type = #tpu.core_type<tc>, window_params = [{transform_indices = @transform_0, window_bounds = array<i64: 16, 384>}, {pipeline_mode = #tpu.pipeline_mode<synchronous>, transform_indices = @transform_1, window_bounds = array<i64: 384, 3>}, {pipeline_mode = #tpu.pipeline_mode<synchronous>, transform_indices = @transform_2, window_bounds = array<i64: 1, 3>}, {transform_indices = @transform_3, window_bounds = array<i64: 16, 3>}]} {
    %c0 = arith.constant 0 : index
    %c0_0 = arith.constant 0 : index
    %0 = vector.load %arg1[%c0, %c0_0] : memref<16x384xf32, #tpu.memory_space<vmem>>, vector<16x384xf32>
    %cst = arith.constant dense<0.000000e+00> : vector<16xf32>
    %1 = vector.multi_reduction <add>, %0, %cst [1] : vector<16x384xf32> to vector<16xf32>
    %2 = vector.shape_cast %1 : vector<16xf32> to vector<16x1xf32>
    %cst_1 = arith.constant 3.840000e+02 : f32
    %3 = vector.broadcast %cst_1 : f32 to vector<16x1xf32>
    %4 = arith.divf %2, %3 : vector<16x1xf32>
    %5 = vector.broadcast %4 : vector<16x1xf32> to vector<16x384xf32>
    %6 = arith.subf %0, %5 : vector<16x384xf32>
    %7 = arith.mulf %6, %6 : vector<16x384xf32>
    %cst_2 = arith.constant dense<0.000000e+00> : vector<16xf32>
    %8 = vector.multi_reduction <add>, %7, %cst_2 [1] : vector<16x384xf32> to vector<16xf32>
    %9 = vector.shape_cast %8 : vector<16xf32> to vector<16x1xf32>
    %cst_3 = arith.constant 3.840000e+02 : f32
    %10 = vector.broadcast %cst_3 : f32 to vector<16x1xf32>
    %11 = arith.divf %9, %10 : vector<16x1xf32>
    %cst_4 = arith.constant 9.99999974E-6 : f32
    %12 = vector.broadcast %cst_4 : f32 to vector<16x1xf32>
    %13 = arith.addf %11, %12 : vector<16x1xf32>
    %14 = math.rsqrt %13 : vector<16x1xf32>
    %c0_5 = arith.constant 0 : index
    %c0_6 = arith.constant 0 : index
    %15 = vector.load %arg2[%c0_5, %c0_6] : memref<384x3xf32, #tpu.memory_space<vmem>>, vector<384x3xf32>
    %cst_7 = arith.constant dense<0.000000e+00> : vector<16x3xf32>
    %16 = tpu.matmul %6, %15, %cst_7 {dimension_numbers = #tpu.dot_dimension_numbers<[1], [0], [0], [1], [0, 0, 1, 1], [], []>} : vector<16x384xf32>, vector<384x3xf32>, vector<16x3xf32> -> vector<16x3xf32>
    %17 = vector.broadcast %14 : vector<16x1xf32> to vector<16x3xf32>
    %18 = arith.mulf %16, %17 : vector<16x3xf32>
    %c0_8 = arith.constant 0 : index
    %c0_9 = arith.constant 0 : index
    %19 = vector.load %arg3[%c0_8, %c0_9] : memref<1x3xf32, #tpu.memory_space<vmem>>, vector<1x3xf32>
    %20 = vector.broadcast %19 : vector<1x3xf32> to vector<16x3xf32>
    %21 = arith.addf %18, %20 : vector<16x3xf32>
    %cst_10 = arith.constant 0.000000e+00 : f32
    %22 = vector.broadcast %cst_10 : f32 to vector<16x3xf32>
    %23 = arith.subf %22, %21 : vector<16x3xf32>
    %24 = math.exp %23 : vector<16x3xf32>
    %cst_11 = arith.constant 1.000000e+00 : f32
    %25 = vector.broadcast %cst_11 : f32 to vector<16x3xf32>
    %26 = arith.addf %25, %24 : vector<16x3xf32>
    %cst_12 = arith.constant 1.000000e+00 : f32
    %27 = vector.broadcast %cst_12 : f32 to vector<16x3xf32>
    %28 = arith.divf %27, %26 : vector<16x3xf32>
    %c0_13 = arith.constant 0 : index
    %c0_14 = arith.constant 0 : index
    %29 = vector.load %arg4[%c0_13, %c0_14] : memref<16x3xf32, #tpu.memory_space<vmem>>, vector<16x3xf32>
    tpu.vector_store %arg4[%c0_13, %c0_14], %28 {strides = array<i32>} : memref<16x3xf32, #tpu.memory_space<vmem>>, vector<16x3xf32>,
    return
  }
  func.func @transform_0(%arg0: i32) -> (i32, i32) {
    %c0_i32 = arith.constant 0 : i32
    %c0_i32_0 = arith.constant 0 : i32
    return %arg0, %c0_i32 : i32, i32
  }
  func.func @transform_1(%arg0: i32) -> (i32, i32) {
    %c0_i32 = arith.constant 0 : i32
    %c0_i32_0 = arith.constant 0 : i32
    %c0_i32_1 = arith.constant 0 : i32
    return %c0_i32, %c0_i32_0 : i32, i32
  }
  func.func @transform_2(%arg0: i32) -> (i32, i32) {
    %c0_i32 = arith.constant 0 : i32
    %c0_i32_0 = arith.constant 0 : i32
    %c0_i32_1 = arith.constant 0 : i32
    return %c0_i32, %c0_i32_0 : i32, i32
  }
  func.func @transform_3(%arg0: i32) -> (i32, i32) {
    %c0_i32 = arith.constant 0 : i32
    %c0_i32_0 = arith.constant 0 : i32
    return %arg0, %c0_i32 : i32, i32
  }
}

</mosaic_0001>

<llo_original>
// kernel: tpu_custom_call.1
$region0: #{tpu_custom_call.1}
  #allocation0 [shape = 'u32[]', space=smem, size = 0x4, offset = 0x4, fixed_abs, tag = 'smem constant byte address 0x4 - core index']
  #allocation1 [shape = 'u32[144,128]{1,0:T(1,128)}', space=vmem, size = 0x12000, scoped, tag = 'internal scratch']
  %s0 = inlined_call_operand.vmem [shape: f32[16,384], index: 0, kind: input, shape index: {}]
  %s1 = inlined_call_operand.vmem [shape: f32[384,3], index: 1, kind: input, shape index: {}]
  %s2 = inlined_call_operand.vmem [shape: f32[1,3], index: 2, kind: input, shape index: {}]
  %s3 = inlined_call_operand.vmem [shape: f32[16,3], index: 3, kind: output, shape index: {}]
  %s4 = sld [smem:[#allocation0]]
  $region22: #{tpu_custom_call.1} parent=0
    _
  %s6 = ssub.s32 1, %s4
  %s7 = scalar_select 0, %s6, %s4
  // Predicated region
  $region2: #{tpu_custom_call.1} parent=0 // pred_check
    _
  $region3: #{tpu_custom_call.1} parent=0 // pred_check_branch
    %9 = sbr.rel (0) target = $region5
  $region4: #{tpu_custom_call.1} parent=0 // pred_region
    _
  $region5: #{tpu_custom_call.1} parent=0 // pred_fallthru
    _
  // Predicated region
  $region6: #{tpu_custom_call.1} parent=0 // pred_check
    _
  $region7: #{tpu_custom_call.1} parent=0 // pred_check_branch
    %11 = sbr.rel (0) target = $region9
  $region8: #{tpu_custom_call.1} parent=0 // pred_region
    _
  $region9: #{tpu_custom_call.1} parent=0 // pred_fallthru
    _
  // Predicated region
  $region10: #{tpu_custom_call.1} parent=0 // pred_check
    _
  $region11: #{tpu_custom_call.1} parent=0 // pred_check_branch
    %13 = sbr.rel (0) target = $region13
  $region12: #{tpu_custom_call.1} parent=0 // pred_region
    _
  $region13: #{tpu_custom_call.1} parent=0 // pred_fallthru
    _
  %v14 = vld [vmem:[%s0] sm:$0xff]
  %v15 = vld [vmem:[%s0 + $0x8] sm:$0xff]
  %v16 = vld [vmem:[%s0 + $0x10] sm:$0xff]
  %v17 = vld [vmem:[%s0 + $0x18] sm:$0xff]
  %v18 = vld [vmem:[%s0 + $0x20] sm:$0xff]
  %v19 = vld [vmem:[%s0 + $0x28] sm:$0xff]
  %v20 = vadd.f32 %v14, %v15
  %v21 = vadd.f32 %v20, %v16
  %22 = vadd.xlane.f32.xlu0 %v21
  %v23 = vpop.xlane.xlu0 %22
  %v24 = vadd.f32 %v17, %v18
  %v25 = vadd.f32 %v24, %v19
  %26 = vadd.xlane.f32.xlu0 %v25
  %v27 = vpop.xlane.xlu0 %26
  %v28 = vrcp.pop 384.0
  %v29 = vmul.f32 %v23, %v28
  %v30 = vmul.f32 %v27, %v28
  %v31 = vsub.f32 %v14, %v29
  %v32 = vsub.f32 %v15, %v29
  %v33 = vsub.f32 %v16, %v29
  %v34 = vsub.f32 %v17, %v30
  %v35 = vsub.f32 %v18, %v30
  %v36 = vsub.f32 %v19, %v30
  %v37 = vmul.f32 %v31, %v31
  %v38 = vmul.f32 %v32, %v32
  %v39 = vmul.f32 %v33, %v33
  %v40 = vmul.f32 %v34, %v34
  %v41 = vmul.f32 %v35, %v35
  %v42 = vmul.f32 %v36, %v36
  %v43 = vadd.f32 %v37, %v38
  %v44 = vadd.f32 %v43, %v39
  %45 = vadd.xlane.f32.xlu0 %v44
  %v46 = vpop.xlane.xlu0 %45
  %v47 = vadd.f32 %v40, %v41
  %v48 = vadd.f32 %v47, %v42
  %49 = vadd.xlane.f32.xlu0 %v48
  %v50 = vpop.xlane.xlu0 %49
  %v51 = vmul.f32 %v46, %v28
  %v52 = vmul.f32 %v50, %v28
  %v53 = vadd.f32 %v51, 1e-05
  %v54 = vadd.f32 %v52, 1e-05
  %v55 = vrsqrt.pop %v53
  %v56 = vrsqrt.pop %v54
  %v57 = vld [vmem:[%s1] sm:$0xff]
  %v58 = vld [vmem:[%s1 + $0x8] sm:$0xff]
  %v59 = vld [vmem:[%s1 + $0x10] sm:$0xff]
  %v60 = vld [vmem:[%s1 + $0x18] sm:$0xff]
  %v61 = vld [vmem:[%s1 + $0x20] sm:$0xff]
  %v62 = vld [vmem:[%s1 + $0x28] sm:$0xff]
  %v63 = vld [vmem:[%s1 + $0x30] sm:$0xff]
  %v64 = vld [vmem:[%s1 + $0x38] sm:$0xff]
  %v65 = vld [vmem:[%s1 + $0x40] sm:$0xff]
  %v66 = vld [vmem:[%s1 + $0x48] sm:$0xff]
  %v67 = vld [vmem:[%s1 + $0x50] sm:$0xff]
  %v68 = vld [vmem:[%s1 + $0x58] sm:$0xff]
  %v69 = vld [vmem:[%s1 + $0x60] sm:$0xff]
  %v70 = vld [vmem:[%s1 + $0x68] sm:$0xff]
  %v71 = vld [vmem:[%s1 + $0x70] sm:$0xff]
  %v72 = vld [vmem:[%s1 + $0x78] sm:$0xff]
  %v73 = vld [vmem:[%s1 + $0x80] sm:$0xff]
  %v74 = vld [vmem:[%s1 + $0x88] sm:$0xff]
  %v75 = vld [vmem:[%s1 + $0x90] sm:$0xff]
  %v76 = vld [vmem:[%s1 + $0x98] sm:$0xff]
  %v77 = vld [vmem:[%s1 + $0xa0] sm:$0xff]
  %v78 = vld [vmem:[%s1 + $0xa8] sm:$0xff]
  %v79 = vld [vmem:[%s1 + $0xb0] sm:$0xff]
  %v80 = vld [vmem:[%s1 + $0xb8] sm:$0xff]
  %v81 = vld [vmem:[%s1 + $0xc0] sm:$0xff]
  %v82 = vld [vmem:[%s1 + $0xc8] sm:$0xff]
  %v83 = vld [vmem:[%s1 + $0xd0] sm:$0xff]
  %v84 = vld [vmem:[%s1 + $0xd8] sm:$0xff]
  %v85 = vld [vmem:[%s1 + $0xe0] sm:$0xff]
  %v86 = vld [vmem:[%s1 + $0xe8] sm:$0xff]
  %v87 = vld [vmem:[%s1 + $0xf0] sm:$0xff]
  %v88 = vld [vmem:[%s1 + $0xf8] sm:$0xff]
  %v89 = vld [vmem:[%s1 + $0x100] sm:$0xff]
  %v90 = vld [vmem:[%s1 + $0x108] sm:$0xff]
  %v91 = vld [vmem:[%s1 + $0x110] sm:$0xff]
  %v92 = vld [vmem:[%s1 + $0x118] sm:$0xff]
  %v93 = vld [vmem:[%s1 + $0x120] sm:$0xff]
  %v94 = vld [vmem:[%s1 + $0x128] sm:$0xff]
  %v95 = vld [vmem:[%s1 + $0x130] sm:$0xff]
  %v96 = vld [vmem:[%s1 + $0x138] sm:$0xff]
  %v97 = vld [vmem:[%s1 + $0x140] sm:$0xff]
  %v98 = vld [vmem:[%s1 + $0x148] sm:$0xff]
  %v99 = vld [vmem:[%s1 + $0x150] sm:$0xff]
  %v100 = vld [vmem:[%s1 + $0x158] sm:$0xff]
  %v101 = vld [vmem:[%s1 + $0x160] sm:$0xff]
  %v102 = vld [vmem:[%s1 + $0x168] sm:$0xff]
  %v103 = vld [vmem:[%s1 + $0x170] sm:$0xff]
  %v104 = vld [vmem:[%s1 + $0x178] sm:$0xff]
  %105 = vmatprep.subr.mxu0 0.0
  %106 = vmatpush1.msra.mxu0 %v72
  %107 = vmatprep.subr.mxu0 0.0
  %108 = vmatpush1.msra.mxu0 %v71
  %109 = vmatprep.subr.mxu0 0.0
  %110 = vmatpush1.msra.mxu0 %v70
  %111 = vmatprep.subr.mxu0 0.0
  %112 = vmatpush1.msra.mxu0 %v69
  %113 = vmatprep.subr.mxu0 0.0
  %114 = vmatpush1.msra.mxu0 %v68
  %115 = vmatprep.subr.mxu0 0.0
  %116 = vmatpush1.msra.mxu0 %v67
  %117 = vmatprep.subr.mxu0 0.0
  %118 = vmatpush1.msra.mxu0 %v66
  %119 = vmatprep.subr.mxu0 0.0
  %120 = vmatpush1.msra.mxu0 %v65
  %121 = vmatprep.subr.mxu0 0.0
  %122 = vmatpush1.msra.mxu0 %v64
  %123 = vmatprep.subr.mxu0 0.0
  %124 = vmatpush1.msra.mxu0 %v63
  %125 = vmatprep.subr.mxu0 0.0
  %126 = vmatpush1.msra.mxu0 %v62
  %127 = vmatprep.subr.mxu0 0.0
  %128 = vmatpush1.msra.mxu0 %v61
  %129 = vmatprep.subr.mxu0 0.0
  %130 = vmatpush1.msra.mxu0 %v60
  %131 = vmatprep.subr.mxu0 0.0
  %132 = vmatpush1.msra.mxu0 %v59
  %133 = vmatprep.subr.mxu0 0.0
  %134 = vmatpush1.msra.mxu0 %v58
  %135 = vmatprep.subr.mxu0 0.0
  %136 = vmatpush1.msra.mxu0 %v57
  %137 = vmatprep.subr.mxu0 0.0
  %138 = vmatpush2.msra.mxu0 %v88
  %139 = vmatprep.subr.mxu0 0.0
  %140 = vmatpush2.msra.mxu0 %v87
  %141 = vmatprep.subr.mxu0 0.0
  %142 = vmatpush2.msra.mxu0 %v86
  %143 = vmatprep.subr.mxu0 0.0
  %144 = vmatpush2.msra.mxu0 %v85
  %145 = vmatprep.subr.mxu0 0.0
  %146 = vmatpush2.msra.mxu0 %v84
  %147 = vmatprep.subr.mxu0 0.0
  %148 = vmatpush2.msra.mxu0 %v83
  %149 = vmatprep.subr.mxu0 0.0
  %150 = vmatpush2.msra.mxu0 %v82
  %151 = vmatprep.subr.mxu0 0.0
  %152 = vmatpush2.msra.mxu0 %v81
  %153 = vmatprep.subr.mxu0 0.0
  %154 = vmatpush2.msra.mxu0 %v80
  %155 = vmatprep.subr.mxu0 0.0
  %156 = vmatpush2.msra.mxu0 %v79
  %157 = vmatprep.subr.mxu0 0.0
  %158 = vmatpush2.msra.mxu0 %v78
  %159 = vmatprep.subr.mxu0 0.0
  %160 = vmatpush2.msra.mxu0 %v77
  %161 = vmatprep.subr.mxu0 0.0
  %162 = vmatpush2.msra.mxu0 %v76
  %163 = vmatprep.subr.mxu0 0.0
  %164 = vmatpush2.msra.mxu0 %v75
  %165 = vmatprep.subr.mxu0 0.0
  %166 = vmatpush2.msra.mxu0 %v74
  %167 = vmatprep.subr.mxu0 0.0
  %168 = vmatpush2.msra.mxu0 %v73
  %169 = vmatprep.mubr.f32.mxu0 %v32
  %170 = vmatmul.mubr.f32.gmra.mxu0 %v31
  %v171 = vpop.f32.mrf.mxu0
  %v172 = vadd.f32 0.0, %v171
  %v173 = vpop.f32.mrf.mxu0
  %174 = vmatprep.mubr.f32.mxu0 %v35
  %175 = vmatmul.mubr.f32.gmra.mxu0 %v34
  %v176 = vpop.f32.mrf.mxu0
  %v177 = vadd.f32 0.0, %v176
  %v178 = vpop.f32.mrf.mxu0
  %179 = vdwg.mxu0
  %180 = vmatprep.subr.mxu0 0.0
  %181 = vmatpush1.msra.mxu0 %v104
  %182 = vmatprep.subr.mxu0 0.0
  %183 = vmatpush1.msra.mxu0 %v103
  %184 = vmatprep.subr.mxu0 0.0
  %185 = vmatpush1.msra.mxu0 %v102
  %186 = vmatprep.subr.mxu0 0.0
  %187 = vmatpush1.msra.mxu0 %v101
  %188 = vmatprep.subr.mxu0 0.0
  %189 = vmatpush1.msra.mxu0 %v100
  %190 = vmatprep.subr.mxu0 0.0
  %191 = vmatpush1.msra.mxu0 %v99
  %192 = vmatprep.subr.mxu0 0.0
  %193 = vmatpush1.msra.mxu0 %v98
  %194 = vmatprep.subr.mxu0 0.0
  %195 = vmatpush1.msra.mxu0 %v97
  %196 = vmatprep.subr.mxu0 0.0
  %197 = vmatpush1.msra.mxu0 %v96
  %198 = vmatprep.subr.mxu0 0.0
  %199 = vmatpush1.msra.mxu0 %v95
  %200 = vmatprep.subr.mxu0 0.0
  %201 = vmatpush1.msra.mxu0 %v94
  %202 = vmatprep.subr.mxu0 0.0
  %203 = vmatpush1.msra.mxu0 %v93
  %204 = vmatprep.subr.mxu0 0.0
  %205 = vmatpush1.msra.mxu0 %v92
  %206 = vmatprep.subr.mxu0 0.0
  %207 = vmatpush1.msra.mxu0 %v91
  %208 = vmatprep.subr.mxu0 0.0
  %209 = vmatpush1.msra.mxu0 %v90
  %210 = vmatprep.subr.mxu0 0.0
  %211 = vmatpush1.msra.mxu0 %v89
  %212 = vmatprep.subr.mxu0 0.0
  %213 = vmatpush2.msra.mxu0 0.0
  %214 = vmatprep.subr.mxu0 0.0
  %215 = vmatpush2.msra.mxu0 0.0
  %216 = vmatprep.subr.mxu0 0.0
  %217 = vmatpush2.msra.mxu0 0.0
  %218 = vmatprep.subr.mxu0 0.0
  %219 = vmatpush2.msra.mxu0 0.0
  %220 = vmatprep.subr.mxu0 0.0
  %221 = vmatpush2.msra.mxu0 0.0
  %222 = vmatprep.subr.mxu0 0.0
  %223 = vmatpush2.msra.mxu0 0.0
  %224 = vmatprep.subr.mxu0 0.0
  %225 = vmatpush2.msra.mxu0 0.0
  %226 = vmatprep.subr.mxu0 0.0
  %227 = vmatpush2.msra.mxu0 0.0
  %228 = vmatprep.subr.mxu0 0.0
  %229 = vmatpush2.msra.mxu0 0.0
  %230 = vmatprep.subr.mxu0 0.0
  %231 = vmatpush2.msra.mxu0 0.0
  %232 = vmatprep.subr.mxu0 0.0
  %233 = vmatpush2.msra.mxu0 0.0
  %234 = vmatprep.subr.mxu0 0.0
  %235 = vmatpush2.msra.mxu0 0.0
  %236 = vmatprep.subr.mxu0 0.0
  %237 = vmatpush2.msra.mxu0 0.0
  %238 = vmatprep.subr.mxu0 0.0
  %239 = vmatpush2.msra.mxu0 0.0
  %240 = vmatprep.subr.mxu0 0.0
  %241 = vmatpush2.msra.mxu0 0.0
  %242 = vmatprep.subr.mxu0 0.0
  %243 = vmatpush2.msra.mxu0 0.0
  %244 = vmatprep.mubr.f32.mxu0 0.0
  %245 = vmatmul.mubr.f32.gmra.mxu0 %v33
  %v246 = vpop.f32.mrf.mxu0
  %v247 = vadd.f32 %v172, %v246
  %v248 = vpop.f32.mrf.mxu0
  %249 = vmatprep.mubr.f32.mxu0 0.0
  %250 = vmatmul.mubr.f32.gmra.mxu0 %v36
  %v251 = vpop.f32.mrf.mxu0
  %v252 = vadd.f32 %v177, %v251
  %v253 = vpop.f32.mrf.mxu0
  %254 = vdwg.mxu0
  %v255 = vmul.f32 %v247, %v55
  %v256 = vmul.f32 %v252, %v56
  %v257 = vld [vmem:[%s2] sm:$0x1]
  %v259 = vlaneseq
  %v260 = vshrl.u32 %v259, 7
  %v261 = vsub.s32 0, %v260
  %v262 = vrot.slane %v257, %v261
  %v264 = vadd.f32 %v255, %v262
  %v265 = vadd.f32 %v256, %v262
  %v266 = vsub.f32 0.0, %v264
  %v267 = vsub.f32 0.0, %v265
  %v268 = vmul.f32 %v266, 1.442695
  %v269 = vpow.pop %v268
  %v270 = vmul.f32 %v267, 1.442695
  %v271 = vpow.pop %v270
  %v272 = vadd.f32 %v269, 1.0
  %v273 = vadd.f32 %v271, 1.0
  %v274 = vrcp.pop %v272
  %v275 = vmul.f32 1.0, %v274
  %v276 = vrcp.pop %v273
  %v277 = vmul.f32 1.0, %v276
  %vm278 = vcmask 23552
  %279 = vst.msk [vmem:[%s3] sm:$0xff] %vm278, %v275
  %280 = vst.msk [vmem:[%s3 + $0x8] sm:$0xff] %vm278, %v277
  // Predicated region
  $region14: #{tpu_custom_call.1} parent=0 // pred_check
    _
  $region15: #{tpu_custom_call.1} parent=0 // pred_check_branch
    %282 = sbr.rel (0) target = $region17
  $region16: #{tpu_custom_call.1} parent=0 // pred_region
    _
  $region17: #{tpu_custom_call.1} parent=0 // pred_fallthru
    _
  // Predicated region
  $region18: #{tpu_custom_call.1} parent=0 // pred_check
    _
  $region19: #{tpu_custom_call.1} parent=0 // pred_check_branch
    %284 = sbr.rel (0) target = $region21
  $region20: #{tpu_custom_call.1} parent=0 // pred_region
    _
  $region21: #{tpu_custom_call.1} parent=0 // pred_fallthru
    _

</llo_original>
